<compile_context>
chip_gen: v7x
topology: tpu7x:2x2x1
jax: 0.10.0
libtpu: 0.0.40
codegen_flags: <defaults>
</compile_context>

<pallas_src>
import math
import functools

import jax
import jax.numpy as jnp
from jax import lax
from jax.experimental import pallas as pl
from jax.experimental.pallas import tpu as pltpu

# ----------------------------- configuration ------------------------------
C = 32            # in-channels (in-kernel GroupNorm requires c == 32)
S = 2             # conf.MODEL.up_kernel_size
K = 3             # conf.MODEL.encode_kernel_size (odd -> padding = K // 2)
GROUP = 1         # conf.MODEL.downupsample_group
D = 1             # fixed self.d = 1 in the module
SHARE = False     # conf.MODEL.share  (False -> per-channel U/V kernels)
NEG_SLOPE = 0.01  # LeakyReLU default
GN_EPS = 1e-5     # GroupNorm default eps
P = D * (2 * S) ** 2 * GROUP   # projection channels = 16
PAD = K // 2


# ------------------------------ Pallas kernel -----------------------------
def _interchannel_z_kernel(xph_ref, uv_ref, gn_ref, z_ref, *, h2, w2, c, k):
    # xph_ref: (4, hp, wp, c)  stride-2 phase planes of the zero-padded input
    # uv_ref : (1, k*k, 2c)    packed per-channel conv taps  [U | V]
    # gn_ref : (2, 1, 2c)      packed GroupNorm affine       [gamma; beta]
    # z_ref  : (1, h2, w2)     bilinear scalar field output (lane-dense W)
    uv = uv_ref[0]                                   # (k*k, 2c)

    # Hoist the column-shifted phase windows out of the tap loop: one shifted
    # load per (phase-row, phase-col, col-offset); duplicate channels to the
    # packed 2c lane axis once here (copies/XLU have slack; VALU is binding).
    col_views = {}
    for pr in range(2):
        for pc in range(2):
            for co in range((k - 1 - pc) // 2 + 1):
                ph = xph_ref[2 * pr + pc, :, co:co + w2, :]       # (hp, w2, c)
                col_views[(pr, pc, co)] = jnp.concatenate([ph, ph], axis=-1)

    # Depthwise stride-2 conv for BOTH branches at once, unrolled over taps.
    # out[y, x, ch] = sum_{dy,dx} x_pad[2y+dy, 2x+dx, ch%c] * uv[dy*k+dx, ch]
    acc = None
    for dy in range(k):
        for dx in range(k):
            win = col_views[(dy % 2, dx % 2, dx // 2)][dy // 2: dy // 2 + h2]
            tap = uv[dy * k + dx: dy * k + dx + 1, :][None]       # (1, 1, 2c)
            acc = win * tap if acc is None else acc + win * tap   # (h2, w2, 2c)

    # GroupNorm(num_channels=c, num_groups=32) with c == 32: every group is
    # exactly one channel -> per-channel stats over spatial dims.  Stats are
    # per-lane, so the packed 2c layout computes both branches in one pass.
    mean = jnp.mean(acc, axis=(0, 1), keepdims=True)
    var = jnp.mean((acc - mean) ** 2, axis=(0, 1), keepdims=True)
    y = (acc - mean) * lax.rsqrt(var + GN_EPS)
    y = y * gn_ref[0][None] + gn_ref[1][None]
    y = jnp.where(y >= 0, y, NEG_SLOPE * y)

    # Bilinear interaction of the U/V halves + channel (lane) reduction.
    z_ref[0] = jnp.sum(y[:, :, :c] * y[:, :, c:], axis=-1) * (1.0 / math.sqrt(c))


# --------------------------------- glue ------------------------------------
def _adaptive_avg_pool_nchw(x, out):
    """Exact PyTorch AdaptiveAvgPool2d((out, out)) semantics (overlapping bins)."""
    _, _, h, w = x.shape

    def edges(size):
        return [((i * size) // out, ((i + 1) * size + out - 1) // out)
                for i in range(out)]

    rows = []
    for (r0, r1) in edges(h):
        cols = [x[:, :, r0:r1, c0:c1].mean(axis=(2, 3)) for (c0, c1) in edges(w)]
        rows.append(jnp.stack(cols, axis=-1))
    return jnp.stack(rows, axis=-2)          # (n, c, out, out)


def _dynamic_params(x, params):
    """The tiny pooled 1x1 convs that generate p_u, p_d, u, v (glue)."""
    xbar = jnp.mean(x, axis=(2, 3))                                  # (n, c)
    p_u = xbar @ params['w_up'].T + params['b_up']                   # (n, P)
    p_d = xbar @ params['w_dp'].T + params['b_dp']                   # (n, P)
    pooled = _adaptive_avg_pool_nchw(x, K)                           # (n, c, K, K)
    u = jnp.einsum('oc,nchw->nohw', params['w_u'], pooled) \
        + params['b_u'][None, :, None, None]                         # (n, c, K, K)
    v = jnp.einsum('oc,nchw->nohw', params['w_v'], pooled) \
        + params['b_v'][None, :, None, None]
    return p_u, p_d, u, v


def interchannel_updown(x, params):
    n, c, h, w = x.shape
    # In-kernel GroupNorm uses per-channel stats: valid only when the group
    # size is 1, i.e. c == num_groups == 32 (hard assert per review).
    assert c == 32, "in-kernel GroupNorm assumes num_groups == num_channels (c == 32)"
    assert h % 2 == 0 and w % 2 == 0, "H and W must be even (stride-2 conv)"
    h2, w2 = h // 2, w // 2

    p_u, p_d, u, v = _dynamic_params(x, params)

    # Pack the U and V per-channel 3x3 taps into one 2c lane axis: (n, 9, 2c).
    u_taps = jnp.transpose(u, (0, 2, 3, 1)).reshape(n, K * K, c)
    v_taps = jnp.transpose(v, (0, 2, 3, 1)).reshape(n, K * K, c)
    uv_taps = jnp.concatenate([u_taps, v_taps], axis=-1)

    # Layout plumbing: NCHW -> padded NHWC -> 4 stride-2 phase planes stacked
    # along one leading axis (single BlockSpec / DMA descriptor per grid step).
    xt = jnp.pad(jnp.transpose(x, (0, 2, 3, 1)),
                 ((0, 0), (PAD, PAD), (PAD, PAD), (0, 0)))           # (n,h+2p,w+2p,c)
    xph = jnp.stack([xt[:, 0::2, 0::2, :], xt[:, 0::2, 1::2, :],
                     xt[:, 1::2, 0::2, :], xt[:, 1::2, 1::2, :]], axis=1)
    hp, wp = xph.shape[2], xph.shape[3]                              # h2+PAD, w2+PAD
    xph = xph.reshape(n * 4, hp, wp, c)

    # Packed GroupNorm affine params: row 0 = gamma, row 1 = beta, lanes = U|V.
    gn = jnp.stack([jnp.concatenate([params['gamma_u'], params['gamma_v']]),
                    jnp.concatenate([params['beta_u'], params['beta_v']])])
    gn = gn[:, None, :]                                              # (2, 1, 2c)

    kernel = functools.partial(_interchannel_z_kernel, h2=h2, w2=w2, c=c, k=K)
    z = pl.pallas_call(
        kernel,
        grid=(n,),
        in_specs=[pl.BlockSpec((4, hp, wp, c), lambda i: (i, 0, 0, 0)),
                  pl.BlockSpec((1, K * K, 2 * c), lambda i: (i, 0, 0)),
                  pl.BlockSpec((2, 1, 2 * c), lambda i: (0, 0, 0))],
        out_specs=pl.BlockSpec((1, h2, w2), lambda i: (i, 0, 0)),
        out_shape=jax.ShapeDtypeStruct((n, h2, w2), jnp.float32),
        compiler_params=pltpu.CompilerParams(
            dimension_semantics=("parallel",),
            vmem_limit_bytes=32 * 1024 * 1024),
    )(xph, uv_taps, gn)

    # 1x1 projections by the dynamic p_u / p_d vectors, folded into the
    # wrapper (trivial broadcasts XLA handles at roofline); d == 1.
    outu_pre = z[..., None] * p_u[:, None, None, :]                  # (n, h2, w2, P)
    outd_pre = z[..., None] * p_d[:, None, None, :]                  # (n, h2, w2, P)

    # out_d: softmax over the 4*s^2 axis at half resolution (NCHW out).
    od = jnp.transpose(outd_pre, (0, 3, 1, 2)).reshape(n, 4 * S * S, GROUP, h2, w2)
    out_d = jax.nn.softmax(od, axis=1).reshape(n, 4 * S * S * GROUP, h2, w2)

    # out_u: sigmoid, softmax over the s^2 axis, pixel_shuffle(2) assembly.
    # channel index q of outu_pre == (si*GROUP + g)*4 + dh*2 + dw
    ou = outu_pre.reshape(n, h2, w2, S * S, GROUP, 2, 2)
    ou = jax.nn.sigmoid(ou)
    if S > 1:
        ou = jax.nn.softmax(ou, axis=3)
    ou = jnp.transpose(ou, (0, 3, 4, 1, 5, 2, 6))   # (n, s^2, g, h2, 2, w2, 2)
    out_u = ou.reshape(n, S * S * GROUP, h, w)
    return out_d, out_u


# ------------------------- pure-JAX reference check ------------------------
def reference_forward(x, params):
    n, c, h, w = x.shape
    h2, w2 = h // 2, w // 2
    p_u, p_d, u, v = _dynamic_params(x, params)

    def dwconv(xi, ker):
        return lax.conv_general_dilated(
            xi[None], ker[:, None], window_strides=(2, 2),
            padding=((PAD, PAD), (PAD, PAD)), feature_group_count=c,
            dimension_numbers=('NCHW', 'OIHW', 'NCHW'),
            precision=lax.Precision.HIGHEST)[0]

    def gn_lrelu(o, gamma, beta):
        g32 = 32
        og = o.reshape(g32, c // g32, h2, w2)
        mean = og.mean(axis=(1, 2, 3), keepdims=True)
        var = ((og - mean) ** 2).mean(axis=(1, 2, 3), keepdims=True)
        y = ((og - mean) / jnp.sqrt(var + GN_EPS)).reshape(c, h2, w2)
        y = y * gamma[:, None, None] + beta[:, None, None]
        return jnp.where(y >= 0, y, NEG_SLOPE * y)

    ous, ods = [], []
    for i in range(n):
        o1 = gn_lrelu(dwconv(x[i], u[i]), params['gamma_u'], params['beta_u'])
        o2 = gn_lrelu(dwconv(x[i], v[i]), params['gamma_v'], params['beta_v'])
        z = (o1 * o2).sum(0) / math.sqrt(c)             # (h2, w2)
        ous.append(p_u[i][:, None, None] * z[None])     # (P, h2, w2)
        ods.append(p_d[i][:, None, None] * z[None])
    ou = jnp.stack(ous)
    od = jnp.stack(ods)

    od = jax.nn.softmax(od.reshape(n, 4 * S * S, GROUP, h2, w2),
                        axis=1).reshape(n, -1, h2, w2)

    ou = ou.reshape(n, S * S * GROUP, 2, 2, h2, w2)
    ou = jnp.transpose(ou, (0, 1, 4, 2, 5, 3)).reshape(n, S * S * GROUP, h, w)
    ou = jax.nn.sigmoid(ou.reshape(n, S * S, GROUP, h, w))
    if S > 1:
        ou = jax.nn.softmax(ou, axis=1)
    return od, ou.reshape(n, -1, h, w)


# ------------------------------ parameter init -----------------------------
def init_params(key, c):
    ks = jax.random.split(key, 10)

    def wt(k, shape, scale=0.1):
        return (scale * jax.random.normal(k, shape)).astype(jnp.float32)

    cu = D if SHARE else D * c
    return dict(
        w_up=wt(ks[0], (P, c)), b_up=wt(ks[1], (P,)),
        w_dp=wt(ks[2], (P, c)), b_dp=wt(ks[3], (P,)),
        w_u=wt(ks[4], (cu, c)), b_u=wt(ks[5], (cu,)),
        w_v=wt(ks[6], (cu, c)), b_v=wt(ks[7], (cu,)),
        gamma_u=(1.0 + 0.1 * jax.random.normal(ks[8], (c,))).astype(jnp.float32),
        beta_u=(0.1 * jax.random.normal(ks[9], (c,))).astype(jnp.float32),
        gamma_v=jnp.ones((c,), jnp.float32),
        beta_v=jnp.zeros((c,), jnp.float32),
    )


if __name__ == "__main__":
    key = jax.random.PRNGKey(0)
    pkey, xkey = jax.random.split(key)
    params = init_params(pkey, C)

    n, h, w = 2, 16, 16
    x = jax.random.normal(xkey, (n, C, h, w), dtype=jnp.float32)

    out_d, out_u = jax.block_until_ready(interchannel_updown(x, params))
    ref_d, ref_u = jax.block_until_ready(reference_forward(x, params))

    assert out_d.shape == (n, 4 * S * S * GROUP, h // 2, w // 2), out_d.shape
    assert out_u.shape == (n, S * S * GROUP, h, w), out_u.shape
    assert jnp.allclose(out_d, ref_d, atol=1e-4, rtol=1e-4)
    assert jnp.allclose(out_u, ref_u, atol=1e-4, rtol=1e-4)
    print("KERNEL_OK")
</pallas_src>

<mosaic_0001>
module attributes {stable_mosaic.version = 11 : i64} {
  func.func @_interchannel_z_kernel(%arg0: i32, %arg1: memref<4x9x9x32xf32, #tpu.memory_space<vmem>>, %arg2: memref<1x9x64xf32, #tpu.memory_space<vmem>>, %arg3: memref<2x1x64xf32, #tpu.memory_space<vmem>>, %arg4: memref<1x8x8xf32, #tpu.memory_space<vmem>>) attributes {dimension_semantics = [#tpu.dimension_semantics<parallel>], iteration_bounds = array<i64: 2>, scalar_prefetch = 0 : i64, scratch_operands = 0 : i64, tpu.core_type = #tpu.core_type<tc>, window_params = [{transform_indices = @transform_0, window_bounds = array<i64: 4, 9, 9, 32>}, {transform_indices = @transform_1, window_bounds = array<i64: 1, 9, 64>}, {pipeline_mode = #tpu.pipeline_mode<synchronous>, transform_indices = @transform_2, window_bounds = array<i64: 2, 1, 64>}, {transform_indices = @transform_3, window_bounds = array<i64: 1, 8, 8>}]} {
    %c0 = arith.constant 0 : index
    %c0_0 = arith.constant 0 : index
    %c0_1 = arith.constant 0 : index
    %0 = vector.load %arg2[%c0, %c0_0, %c0_1] : memref<1x9x64xf32, #tpu.memory_space<vmem>>, vector<1x9x64xf32>
    %1 = vector.shape_cast %0 : vector<1x9x64xf32> to vector<9x64xf32>
    %c0_2 = arith.constant 0 : index
    %c0_3 = arith.constant 0 : index
    %c0_4 = arith.constant 0 : index
    %c0_5 = arith.constant 0 : index
    %2 = vector.load %arg1[%c0_2, %c0_3, %c0_4, %c0_5] : memref<4x9x9x32xf32, #tpu.memory_space<vmem>>, vector<1x9x8x32xf32>
    %3 = vector.shape_cast %2 : vector<1x9x8x32xf32> to vector<9x8x32xf32>
    %4 = tpu.concatenate %3, %3 in 2 : vector<9x8x32xf32>, vector<9x8x32xf32> -> vector<9x8x64xf32>
    %c0_6 = arith.constant 0 : index
    %c0_7 = arith.constant 0 : index
    %c1 = arith.constant 1 : index
    %c0_8 = arith.constant 0 : index
    %5 = vector.load %arg1[%c0_6, %c0_7, %c1, %c0_8] : memref<4x9x9x32xf32, #tpu.memory_space<vmem>>, vector<1x9x8x32xf32>
    %6 = vector.shape_cast %5 : vector<1x9x8x32xf32> to vector<9x8x32xf32>
    %7 = tpu.concatenate %6, %6 in 2 : vector<9x8x32xf32>, vector<9x8x32xf32> -> vector<9x8x64xf32>
    %c1_9 = arith.constant 1 : index
    %c0_10 = arith.constant 0 : index
    %c0_11 = arith.constant 0 : index
    %c0_12 = arith.constant 0 : index
    %8 = vector.load %arg1[%c1_9, %c0_10, %c0_11, %c0_12] : memref<4x9x9x32xf32, #tpu.memory_space<vmem>>, vector<1x9x8x32xf32>
    %9 = vector.shape_cast %8 : vector<1x9x8x32xf32> to vector<9x8x32xf32>
    %10 = tpu.concatenate %9, %9 in 2 : vector<9x8x32xf32>, vector<9x8x32xf32> -> vector<9x8x64xf32>
    %c2 = arith.constant 2 : index
    %c0_13 = arith.constant 0 : index
    %c0_14 = arith.constant 0 : index
    %c0_15 = arith.constant 0 : index
    %11 = vector.load %arg1[%c2, %c0_13, %c0_14, %c0_15] : memref<4x9x9x32xf32, #tpu.memory_space<vmem>>, vector<1x9x8x32xf32>
    %12 = vector.shape_cast %11 : vector<1x9x8x32xf32> to vector<9x8x32xf32>
    %13 = tpu.concatenate %12, %12 in 2 : vector<9x8x32xf32>, vector<9x8x32xf32> -> vector<9x8x64xf32>
    %c2_16 = arith.constant 2 : index
    %c0_17 = arith.constant 0 : index
    %c1_18 = arith.constant 1 : index
    %c0_19 = arith.constant 0 : index
    %14 = vector.load %arg1[%c2_16, %c0_17, %c1_18, %c0_19] : memref<4x9x9x32xf32, #tpu.memory_space<vmem>>, vector<1x9x8x32xf32>
    %15 = vector.shape_cast %14 : vector<1x9x8x32xf32> to vector<9x8x32xf32>
    %16 = tpu.concatenate %15, %15 in 2 : vector<9x8x32xf32>, vector<9x8x32xf32> -> vector<9x8x64xf32>
    %c3 = arith.constant 3 : index
    %c0_20 = arith.constant 0 : index
    %c0_21 = arith.constant 0 : index
    %c0_22 = arith.constant 0 : index
    %17 = vector.load %arg1[%c3, %c0_20, %c0_21, %c0_22] : memref<4x9x9x32xf32, #tpu.memory_space<vmem>>, vector<1x9x8x32xf32>
    %18 = vector.shape_cast %17 : vector<1x9x8x32xf32> to vector<9x8x32xf32>
    %19 = tpu.concatenate %18, %18 in 2 : vector<9x8x32xf32>, vector<9x8x32xf32> -> vector<9x8x64xf32>
    %20 = vector.extract_strided_slice %4 {offsets = [0, 0, 0], sizes = [8, 8, 64], strides = [1, 1, 1]} : vector<9x8x64xf32> to vector<8x8x64xf32>
    %21 = vector.extract_strided_slice %1 {offsets = [0, 0], sizes = [1, 64], strides = [1, 1]} : vector<9x64xf32> to vector<1x64xf32>
    %22 = vector.shape_cast %21 : vector<1x64xf32> to vector<1x1x64xf32>
    %23 = vector.broadcast %22 : vector<1x1x64xf32> to vector<8x8x64xf32>
    %24 = arith.mulf %20, %23 : vector<8x8x64xf32>
    %25 = vector.extract_strided_slice %10 {offsets = [0, 0, 0], sizes = [8, 8, 64], strides = [1, 1, 1]} : vector<9x8x64xf32> to vector<8x8x64xf32>
    %26 = vector.extract_strided_slice %1 {offsets = [1, 0], sizes = [1, 64], strides = [1, 1]} : vector<9x64xf32> to vector<1x64xf32>
    %27 = vector.shape_cast %26 : vector<1x64xf32> to vector<1x1x64xf32>
    %28 = vector.broadcast %27 : vector<1x1x64xf32> to vector<8x8x64xf32>
    %29 = arith.mulf %25, %28 : vector<8x8x64xf32>
    %30 = arith.addf %24, %29 : vector<8x8x64xf32>
    %31 = vector.extract_strided_slice %7 {offsets = [0, 0, 0], sizes = [8, 8, 64], strides = [1, 1, 1]} : vector<9x8x64xf32> to vector<8x8x64xf32>
    %32 = vector.extract_strided_slice %1 {offsets = [2, 0], sizes = [1, 64], strides = [1, 1]} : vector<9x64xf32> to vector<1x64xf32>
    %33 = vector.shape_cast %32 : vector<1x64xf32> to vector<1x1x64xf32>
    %34 = vector.broadcast %33 : vector<1x1x64xf32> to vector<8x8x64xf32>
    %35 = arith.mulf %31, %34 : vector<8x8x64xf32>
    %36 = arith.addf %30, %35 : vector<8x8x64xf32>
    %37 = vector.extract_strided_slice %13 {offsets = [0, 0, 0], sizes = [8, 8, 64], strides = [1, 1, 1]} : vector<9x8x64xf32> to vector<8x8x64xf32>
    %38 = vector.extract_strided_slice %1 {offsets = [3, 0], sizes = [1, 64], strides = [1, 1]} : vector<9x64xf32> to vector<1x64xf32>
    %39 = vector.shape_cast %38 : vector<1x64xf32> to vector<1x1x64xf32>
    %40 = vector.broadcast %39 : vector<1x1x64xf32> to vector<8x8x64xf32>
    %41 = arith.mulf %37, %40 : vector<8x8x64xf32>
    %42 = arith.addf %36, %41 : vector<8x8x64xf32>
    %43 = vector.extract_strided_slice %19 {offsets = [0, 0, 0], sizes = [8, 8, 64], strides = [1, 1, 1]} : vector<9x8x64xf32> to vector<8x8x64xf32>
    %44 = vector.extract_strided_slice %1 {offsets = [4, 0], sizes = [1, 64], strides = [1, 1]} : vector<9x64xf32> to vector<1x64xf32>
    %45 = vector.shape_cast %44 : vector<1x64xf32> to vector<1x1x64xf32>
    %46 = vector.broadcast %45 : vector<1x1x64xf32> to vector<8x8x64xf32>
    %47 = arith.mulf %43, %46 : vector<8x8x64xf32>
    %48 = arith.addf %42, %47 : vector<8x8x64xf32>
    %49 = vector.extract_strided_slice %16 {offsets = [0, 0, 0], sizes = [8, 8, 64], strides = [1, 1, 1]} : vector<9x8x64xf32> to vector<8x8x64xf32>
    %50 = vector.extract_strided_slice %1 {offsets = [5, 0], sizes = [1, 64], strides = [1, 1]} : vector<9x64xf32> to vector<1x64xf32>
    %51 = vector.shape_cast %50 : vector<1x64xf32> to vector<1x1x64xf32>
    %52 = vector.broadcast %51 : vector<1x1x64xf32> to vector<8x8x64xf32>
    %53 = arith.mulf %49, %52 : vector<8x8x64xf32>
    %54 = arith.addf %48, %53 : vector<8x8x64xf32>
    %55 = vector.extract_strided_slice %4 {offsets = [1, 0, 0], sizes = [8, 8, 64], strides = [1, 1, 1]} : vector<9x8x64xf32> to vector<8x8x64xf32>
    %56 = vector.extract_strided_slice %1 {offsets = [6, 0], sizes = [1, 64], strides = [1, 1]} : vector<9x64xf32> to vector<1x64xf32>
    %57 = vector.shape_cast %56 : vector<1x64xf32> to vector<1x1x64xf32>
    %58 = vector.broadcast %57 : vector<1x1x64xf32> to vector<8x8x64xf32>
    %59 = arith.mulf %55, %58 : vector<8x8x64xf32>
    %60 = arith.addf %54, %59 : vector<8x8x64xf32>
    %61 = vector.extract_strided_slice %10 {offsets = [1, 0, 0], sizes = [8, 8, 64], strides = [1, 1, 1]} : vector<9x8x64xf32> to vector<8x8x64xf32>
    %62 = vector.extract_strided_slice %1 {offsets = [7, 0], sizes = [1, 64], strides = [1, 1]} : vector<9x64xf32> to vector<1x64xf32>
    %63 = vector.shape_cast %62 : vector<1x64xf32> to vector<1x1x64xf32>
    %64 = vector.broadcast %63 : vector<1x1x64xf32> to vector<8x8x64xf32>
    %65 = arith.mulf %61, %64 : vector<8x8x64xf32>
    %66 = arith.addf %60, %65 : vector<8x8x64xf32>
    %67 = vector.extract_strided_slice %7 {offsets = [1, 0, 0], sizes = [8, 8, 64], strides = [1, 1, 1]} : vector<9x8x64xf32> to vector<8x8x64xf32>
    %68 = vector.extract_strided_slice %1 {offsets = [8, 0], sizes = [1, 64], strides = [1, 1]} : vector<9x64xf32> to vector<1x64xf32>
    %69 = vector.shape_cast %68 : vector<1x64xf32> to vector<1x1x64xf32>
    %70 = vector.broadcast %69 : vector<1x1x64xf32> to vector<8x8x64xf32>
    %71 = arith.mulf %67, %70 : vector<8x8x64xf32>
    %72 = arith.addf %66, %71 : vector<8x8x64xf32>
    %cst = arith.constant dense<0.000000e+00> : vector<64xf32>
    %73 = vector.multi_reduction <add>, %72, %cst [0, 1] : vector<8x8x64xf32> to vector<64xf32>
    %74 = vector.shape_cast %73 : vector<64xf32> to vector<1x1x64xf32>
    %cst_23 = arith.constant 6.400000e+01 : f32
    %75 = vector.broadcast %cst_23 : f32 to vector<1x1x64xf32>
    %76 = arith.divf %74, %75 : vector<1x1x64xf32>
    %77 = vector.broadcast %76 : vector<1x1x64xf32> to vector<8x8x64xf32>
    %78 = arith.subf %72, %77 : vector<8x8x64xf32>
    %79 = arith.mulf %78, %78 : vector<8x8x64xf32>
    %cst_24 = arith.constant dense<0.000000e+00> : vector<64xf32>
    %80 = vector.multi_reduction <add>, %79, %cst_24 [0, 1] : vector<8x8x64xf32> to vector<64xf32>
    %81 = vector.shape_cast %80 : vector<64xf32> to vector<1x1x64xf32>
    %cst_25 = arith.constant 6.400000e+01 : f32
    %82 = vector.broadcast %cst_25 : f32 to vector<1x1x64xf32>
    %83 = arith.divf %81, %82 : vector<1x1x64xf32>
    %84 = vector.broadcast %76 : vector<1x1x64xf32> to vector<8x8x64xf32>
    %85 = arith.subf %72, %84 : vector<8x8x64xf32>
    %cst_26 = arith.constant 9.99999974E-6 : f32
    %86 = vector.broadcast %cst_26 : f32 to vector<1x1x64xf32>
    %87 = arith.addf %83, %86 : vector<1x1x64xf32>
    %88 = math.rsqrt %87 : vector<1x1x64xf32>
    %89 = vector.broadcast %88 : vector<1x1x64xf32> to vector<8x8x64xf32>
    %90 = arith.mulf %85, %89 : vector<8x8x64xf32>
    %c0_27 = arith.constant 0 : index
    %c0_28 = arith.constant 0 : index
    %c0_29 = arith.constant 0 : index
    %91 = vector.load %arg3[%c0_27, %c0_28, %c0_29] : memref<2x1x64xf32, #tpu.memory_space<vmem>>, vector<1x1x64xf32>
    %92 = vector.shape_cast %91 : vector<1x1x64xf32> to vector<1x64xf32>
    %93 = vector.shape_cast %92 : vector<1x64xf32> to vector<1x1x64xf32>
    %94 = vector.broadcast %93 : vector<1x1x64xf32> to vector<8x8x64xf32>
    %95 = arith.mulf %90, %94 : vector<8x8x64xf32>
    %c1_30 = arith.constant 1 : index
    %c0_31 = arith.constant 0 : index
    %c0_32 = arith.constant 0 : index
    %96 = vector.load %arg3[%c1_30, %c0_31, %c0_32] : memref<2x1x64xf32, #tpu.memory_space<vmem>>, vector<1x1x64xf32>
    %97 = vector.shape_cast %96 : vector<1x1x64xf32> to vector<1x64xf32>
    %98 = vector.shape_cast %97 : vector<1x64xf32> to vector<1x1x64xf32>
    %99 = vector.broadcast %98 : vector<1x1x64xf32> to vector<8x8x64xf32>
    %100 = arith.addf %95, %99 : vector<8x8x64xf32>
    %cst_33 = arith.constant 0.000000e+00 : f32
    %101 = vector.broadcast %cst_33 : f32 to vector<8x8x64xf32>
    %102 = arith.cmpf oge, %100, %101 : vector<8x8x64xf32>
    %cst_34 = arith.constant 0.00999999977 : f32
    %103 = vector.broadcast %cst_34 : f32 to vector<8x8x64xf32>
    %104 = arith.mulf %103, %100 : vector<8x8x64xf32>
    %105 = arith.select %102, %100, %104 : vector<8x8x64xi1>, vector<8x8x64xf32>
    %106 = vector.extract_strided_slice %105 {offsets = [0, 0, 0], sizes = [8, 8, 32], strides = [1, 1, 1]} : vector<8x8x64xf32> to vector<8x8x32xf32>
    %107 = vector.extract_strided_slice %105 {offsets = [0, 0, 32], sizes = [8, 8, 32], strides = [1, 1, 1]} : vector<8x8x64xf32> to vector<8x8x32xf32>
    %108 = arith.mulf %106, %107 : vector<8x8x32xf32>
    %cst_35 = arith.constant dense<0.000000e+00> : vector<8x8xf32>
    %109 = vector.multi_reduction <add>, %108, %cst_35 [2] : vector<8x8x32xf32> to vector<8x8xf32>
    %cst_36 = arith.constant 0.176776692 : f32
    %110 = vector.broadcast %cst_36 : f32 to vector<8x8xf32>
    %111 = arith.mulf %109, %110 : vector<8x8xf32>
    %c0_37 = arith.constant 0 : index
    %c0_38 = arith.constant 0 : index
    %c0_39 = arith.constant 0 : index
    %112 = vector.load %arg4[%c0_37, %c0_38, %c0_39] : memref<1x8x8xf32, #tpu.memory_space<vmem>>, vector<1x8x8xf32>
    %113 = vector.shape_cast %112 : vector<1x8x8xf32> to vector<8x8xf32>
    %114 = vector.shape_cast %111 : vector<8x8xf32> to vector<1x8x8xf32>
    tpu.vector_store %arg4[%c0_37, %c0_38, %c0_39], %114 {strides = array<i32>} : memref<1x8x8xf32, #tpu.memory_space<vmem>>, vector<1x8x8xf32>,
    return
  }
  func.func @transform_0(%arg0: i32) -> (i32, i32, i32, i32) {
    %c0_i32 = arith.constant 0 : i32
    %c0_i32_0 = arith.constant 0 : i32
    %c0_i32_1 = arith.constant 0 : i32
    %c0_i32_2 = arith.constant 0 : i32
    return %arg0, %c0_i32, %c0_i32_0, %c0_i32_1 : i32, i32, i32, i32
  }
  func.func @transform_1(%arg0: i32) -> (i32, i32, i32) {
    %c0_i32 = arith.constant 0 : i32
    %c0_i32_0 = arith.constant 0 : i32
    %c0_i32_1 = arith.constant 0 : i32
    return %arg0, %c0_i32, %c0_i32_0 : i32, i32, i32
  }
  func.func @transform_2(%arg0: i32) -> (i32, i32, i32) {
    %c0_i32 = arith.constant 0 : i32
    %c0_i32_0 = arith.constant 0 : i32
    %c0_i32_1 = arith.constant 0 : i32
    %c0_i32_2 = arith.constant 0 : i32
    return %c0_i32, %c0_i32_0, %c0_i32_1 : i32, i32, i32
  }
  func.func @transform_3(%arg0: i32) -> (i32, i32, i32) {
    %c0_i32 = arith.constant 0 : i32
    %c0_i32_0 = arith.constant 0 : i32
    %c0_i32_1 = arith.constant 0 : i32
    return %arg0, %c0_i32, %c0_i32_0 : i32, i32, i32
  }
}

</mosaic_0001>

<llo_original>
// kernel: tpu_custom_call.1
$region0: #{tpu_custom_call.1}
  #allocation0 [shape = 'u32[]', space=smem, size = 0x4, offset = 0x4, fixed_abs, tag = 'smem constant byte address 0x4 - core index']
  #allocation1 [shape = 'u32[144,128]{1,0:T(1,128)}', space=vmem, size = 0x12000, scoped, tag = 'internal scratch']
  %s0 = inlined_call_operand.vmem [shape: f32[8,9,9,32], index: 0, kind: input, shape index: {}]
  %s1 = inlined_call_operand.vmem [shape: f32[2,9,64], index: 1, kind: input, shape index: {}]
  %s2 = inlined_call_operand.vmem [shape: f32[2,1,64], index: 2, kind: input, shape index: {}]
  %s3 = inlined_call_operand.hbm [shape: f32[2,8,8], index: 3, kind: output, shape index: {}]
  %s4 = sld [smem:[#allocation0]]
  $region45: #{tpu_custom_call.1} parent=0
    _
  %s6 = ssub.s32 1, %s4
  %s7 = scalar_select 0, %s6, %s4
  $region1: #{tpu_custom_call.1} parent=0
    #allocation2 [shape = 'u8[8192]{0}', space=vmem, size = 0x2000, scoped, tag = 'output window, operand 0']
    #allocation3 [shape = 's32[2]{0}', space=sflag, size = 0x8, scoped, tag = 'scoped memory for tpu_custom_call.1']
    %8 = vsyncpa [#allocation3], 0
    %s9 = scalar_lea.sflag [#allocation3], 1
    %10 = vsyncpa %s9, 0
    loop: start=0, step=1, limit=4
    $region2: #{tpu_custom_call.1} parent=1 // loop_pre_header
      _
    $region3: #{tpu_custom_call.1} parent=1 // loop_header
      %s12 = sphi 0, %s16
      %p13 = scmp.ge.s32.totalorder %s12, 4
      %s22 = sphi 0, %s24
      %s25 = sphi 0, %s22
      %s26 = sphi 0, %s25
      %s42 = sphi 0, %s26
      %s48 = sphi 0, %s50
      %s51 = sphi 0, %s48
      %s52 = sphi 0, %s51
      %s68 = sphi 0, %s52
      %s72 = sphi 0, %s72
      %s74 = sphi 0, %s72
      %s75 = sphi 0, %s74
      %s89 = sphi 0, %s75
      %s95 = sphi 0, %s97
      %s98 = sphi 0, %s95
      %s99 = sphi 0, %s98
      %s115 = sphi 0, %s99
    $region4: #{tpu_custom_call.1} parent=1 // loop_header_branch
      %15 = sbr.rel (%p13) target = $region8
    $region5: #{tpu_custom_call.1} parent=1 // loop_body
      %s17 = ssub.s32 %s12, 1
      %s18 = ssub.s32 %s12, 2
      %s19 = sadd.s32 %s12, 1
      %s20 = ssub.s32 %s12, %s19
      %p21 = scmp.eq.s32.totalorder %s20, 0
      %s23 = sadd.s32 %s22, 1
      %s24 = scalar_select %p21, %s22, %s23
      %p27 = pneg %p21
      %p28 = scmp.eq.s32.totalorder %s12, 1
      %p29 = por %p27, %p28
      %p30 = scmp.ne.s32.totalorder %s22, %s25
      %p31 = scmp.eq.s32.totalorder %s12, 0
      %p32 = por %p30, %p31
      %p33 = scmp.ne.s32.totalorder %s22, %s25
      %p34 = scmp.eq.s32.totalorder %s17, 1
      %p35 = por %p33, %p34
      %p36 = scmp.ne.s32.totalorder %s25, %s26
      %p37 = scmp.eq.s32.totalorder %s17, 0
      %p38 = por %p36, %p37
      %p39 = scmp.ne.s32.totalorder %s25, %s26
      %p40 = scmp.eq.s32.totalorder %s18, 1
      %p41 = por %p39, %p40
      %p43 = scmp.ne.s32.totalorder %s26, %s42
      %p44 = scmp.eq.s32.totalorder %s18, 0
      %p45 = por %p43, %p44
      %s46 = ssub.s32 %s12, %s19
      %p47 = scmp.eq.s32.totalorder %s46, 0
      %s49 = sadd.s32 %s48, 1
      %s50 = scalar_select %p47, %s48, %s49
      %p53 = pneg %p47
      %p54 = scmp.eq.s32.totalorder %s12, 1
      %p55 = por %p53, %p54
      %p56 = scmp.ne.s32.totalorder %s48, %s51
      %p57 = scmp.eq.s32.totalorder %s12, 0
      %p58 = por %p56, %p57
      %p59 = scmp.ne.s32.totalorder %s48, %s51
      %p60 = scmp.eq.s32.totalorder %s17, 1
      %p61 = por %p59, %p60
      %p62 = scmp.ne.s32.totalorder %s51, %s52
      %p63 = scmp.eq.s32.totalorder %s17, 0
      %p64 = por %p62, %p63
      %p65 = scmp.ne.s32.totalorder %s51, %s52
      %p66 = scmp.eq.s32.totalorder %s18, 1
      %p67 = por %p65, %p66
      %p69 = scmp.ne.s32.totalorder %s52, %s68
      %p70 = scmp.eq.s32.totalorder %s18, 0
      %p71 = por %p69, %p70
      %s73 = sadd.s32 %s72, 1
      %p76 = scmp.eq.s32.totalorder %s12, 1
      %p77 = scmp.ne.s32.totalorder %s72, %s74
      %p78 = scmp.eq.s32.totalorder %s12, 0
      %p79 = por %p77, %p78
      %p80 = scmp.ne.s32.totalorder %s72, %s74
      %p81 = scmp.eq.s32.totalorder %s17, 1
      %p82 = por %p80, %p81
      %p83 = scmp.ne.s32.totalorder %s74, %s75
      %p84 = scmp.eq.s32.totalorder %s17, 0
      %p85 = por %p83, %p84
      %p86 = scmp.ne.s32.totalorder %s74, %s75
      %p87 = scmp.eq.s32.totalorder %s18, 1
      %p88 = por %p86, %p87
      %p90 = scmp.ne.s32.totalorder %s75, %s89
      %p91 = scmp.eq.s32.totalorder %s18, 0
      %p92 = por %p90, %p91
      %s93 = ssub.s32 %s12, %s19
      %p94 = scmp.eq.s32.totalorder %s93, 0
      %s96 = sadd.s32 %s95, 1
      %s97 = scalar_select %p94, %s95, %s96
      %p100 = pneg %p94
      %p101 = scmp.eq.s32.totalorder %s12, 1
      %p102 = por %p100, %p101
      %p103 = scmp.ne.s32.totalorder %s95, %s98
      %p104 = scmp.eq.s32.totalorder %s12, 0
      %p105 = por %p103, %p104
      %p106 = scmp.ne.s32.totalorder %s95, %s98
      %p107 = scmp.eq.s32.totalorder %s17, 1
      %p108 = por %p106, %p107
      %p109 = scmp.ne.s32.totalorder %s98, %s99
      %p110 = scmp.eq.s32.totalorder %s17, 0
      %p111 = por %p109, %p110
      %p112 = scmp.ne.s32.totalorder %s98, %s99
      %p113 = scmp.eq.s32.totalorder %s18, 1
      %p114 = por %p112, %p113
      %p116 = scmp.ne.s32.totalorder %s99, %s115
      %p117 = scmp.eq.s32.totalorder %s18, 0
      %p118 = por %p116, %p117
      %p119 = scmp.le.s32.totalorder 1, %s12
      %p120 = scmp.lt.s32.totalorder %s12, 3
      %p121 = pnand %p119, %p120
      %p122 = pneg %p121
      // Predicated region
      $region9: #{tpu_custom_call.1} parent=5 // pred_check
        _
      $region10: #{tpu_custom_call.1} parent=5 // pred_check_branch
        %124 = sbr.rel (%p121) target = $region12
      $region11: #{tpu_custom_call.1} parent=5 // pred_region
        %s125 = ssub.s32 %s12, 1
        // Predicated region
        $region13: #{tpu_custom_call.1} parent=11 // pred_check
          %p126 = pneg %p85
        $region14: #{tpu_custom_call.1} parent=11 // pred_check_branch
          %128 = sbr.rel (%p126) target = $region16
        $region15: #{tpu_custom_call.1} parent=11 // pred_region
          _
        $region16: #{tpu_custom_call.1} parent=11 // pred_fallthru
          _
      $region12: #{tpu_custom_call.1} parent=5 // pred_fallthru
        _
      %p129 = scmp.lt.s32.totalorder %s12, 2
      // Predicated region
      $region17: #{tpu_custom_call.1} parent=5 // pred_check
        %p130 = pneg %p129
      $region18: #{tpu_custom_call.1} parent=5 // pred_check_branch
        %132 = sbr.rel (%p130) target = $region20
      $region19: #{tpu_custom_call.1} parent=5 // pred_region
        // Predicated region
        $region21: #{tpu_custom_call.1} parent=19 // pred_check
          %p133 = pneg %p32
        $region22: #{tpu_custom_call.1} parent=19 // pred_check_branch
          %135 = sbr.rel (%p133) target = $region24
        $region23: #{tpu_custom_call.1} parent=19 // pred_region
          %s136 = smul.u32 4, %s12
          %p137 = scmp.lt.s32.totalorder %s136, 7
          %s138 = scalar_select %p137, %s136, 7
          %s139 = smul.addr %s138, 18
          %s140 = smul.addr %s139, 8
          %s141 = scalar_lea.vmem %s0, %s140
          %s142 = smul.u32 4, %s12
        $region24: #{tpu_custom_call.1} parent=19 // pred_fallthru
          _
        // Predicated region
        $region25: #{tpu_custom_call.1} parent=19 // pred_check
          %p143 = pneg %p58
        $region26: #{tpu_custom_call.1} parent=19 // pred_check_branch
          %145 = sbr.rel (%p143) target = $region28
        $region27: #{tpu_custom_call.1} parent=19 // pred_region
          %p146 = scmp.lt.s32.totalorder %s12, 1
          %s147 = scalar_select %p146, %s12, 1
          %s148 = smul.addr %s147, 2
          %s149 = smul.addr %s148, 8
          %s150 = scalar_lea.vmem %s1, %s149
        $region28: #{tpu_custom_call.1} parent=19 // pred_fallthru
          _
      $region20: #{tpu_custom_call.1} parent=5 // pred_fallthru
        _
      %p151 = scmp.le.s32.totalorder 1, %s12
      %p152 = scmp.lt.s32.totalorder %s12, 3
      %p153 = pnand %p151, %p152
      %p154 = pneg %p153
      // Predicated region
      $region29: #{tpu_custom_call.1} parent=5 // pred_check
        _
      $region30: #{tpu_custom_call.1} parent=5 // pred_check_branch
        %156 = sbr.rel (%p153) target = $region32
      $region31: #{tpu_custom_call.1} parent=5 // pred_region
        %s157 = ssub.s32 %s12, 1
        %s158 = smul.u32 4, %s17
        %p159 = scmp.lt.s32.totalorder %s158, 7
        %s160 = scalar_select %p159, %s158, 7
        %s161 = smul.addr %s160, 18
        %s162 = smul.addr %s161, 8
        %s163 = scalar_lea.vmem %s0, %s162
        %p164 = pneg %p38
        %p165 = pneg %p35
        %p166 = scmp.lt.s32.totalorder %s17, 1
        %s167 = scalar_select %p166, %s17, 1
        %s168 = smul.addr %s167, 2
        %s169 = smul.addr %s168, 8
        %s170 = scalar_lea.vmem %s1, %s169
        %p171 = pneg %p64
        %p172 = pneg %p61
        %p173 = pneg %p85
        %p174 = pneg %p82
        %p175 = pneg %p111
        %p176 = pneg %p108
        %s177 = sand.u32 %s98, 1
        %s178 = scalar_lea.sflag [#allocation3], %s177
        %s179 = sand.u32 %s98, 1
        %s180 = smul.addr %s179, 8
        %s181 = scalar_lea.vmem [#allocation2], %s180
        %s182 = smul.u32 4, %s17
        %p183 = scmp.lt.s32.totalorder %s182, 7
        %s184 = scalar_select %p183, %s182, 7
        %s185 = smul.addr %s184, 18
        %s186 = smul.addr %s185, 8
        %s187 = scalar_lea.vmem %s0, %s186
        %s188 = smul.u32 4, %s17
        %p189 = scmp.lt.s32.totalorder %s17, 1
        %s190 = scalar_select %p189, %s17, 1
        %s191 = smul.addr %s190, 2
        %s192 = smul.addr %s191, 8
        %s193 = scalar_lea.vmem %s1, %s192
        %v194 = vld [vmem:[%s193] sm:$0xff]
        %v195 = vld [vmem:[%s193 + $0x8] sm:$0x1]
        %v196 = vld [vmem:[%s187] sm:$0xff]
        %v197 = vld [vmem:[%s187 + $0x10] sm:$0xff]
        %v198 = vld [vmem:[%s187 + $0x20] sm:$0xff]
        %v199 = vld [vmem:[%s187 + $0x30] sm:$0xff]
        %v200 = vld [vmem:[%s187 + $0x40] sm:$0xff]
        %v201 = vld [vmem:[%s187 + $0x50] sm:$0xff]
        %v202 = vld [vmem:[%s187 + $0x60] sm:$0xff]
        %v203 = vld [vmem:[%s187 + $0x70] sm:$0xff]
        %v204 = vld [vmem:[%s187 + $0x80] sm:$0xff]
        %214 = vrot.lane.b32.xlu0 %v196, 32
        %v215 = vpop.permute.xlu0 %214
        %216 = vrot.lane.b32.xlu0 %v197, 32
        %v217 = vpop.permute.xlu0 %216
        %218 = vrot.lane.b32.xlu0 %v198, 32
        %v219 = vpop.permute.xlu0 %218
        %220 = vrot.lane.b32.xlu0 %v199, 32
        %v221 = vpop.permute.xlu0 %220
        %222 = vrot.lane.b32.xlu0 %v200, 32
        %v223 = vpop.permute.xlu0 %222
        %224 = vrot.lane.b32.xlu0 %v201, 32
        %v225 = vpop.permute.xlu0 %224
        %226 = vrot.lane.b32.xlu0 %v202, 32
        %v227 = vpop.permute.xlu0 %226
        %228 = vrot.lane.b32.xlu0 %v203, 32
        %v229 = vpop.permute.xlu0 %228
        %230 = vrot.lane.b32.xlu0 %v204, 32
        %v231 = vpop.permute.xlu0 %230
        %vm241 = vcmask 261120
        %v242 = vsel %vm241, %v196, %v215
        %v243 = vsel %vm241, %v197, %v217
        %v244 = vsel %vm241, %v198, %v219
        %v245 = vsel %vm241, %v199, %v221
        %v246 = vsel %vm241, %v200, %v223
        %v247 = vsel %vm241, %v201, %v225
        %v248 = vsel %vm241, %v202, %v227
        %v249 = vsel %vm241, %v203, %v229
        %v250 = vsel %vm241, %v204, %v231
        %v251 = vld [vmem:[%s187 + $0x1] sm:$0xff]
        %v252 = vld [vmem:[%s187 + $0x11] sm:$0xff]
        %v253 = vld [vmem:[%s187 + $0x21] sm:$0xff]
        %v254 = vld [vmem:[%s187 + $0x31] sm:$0xff]
        %v255 = vld [vmem:[%s187 + $0x41] sm:$0xff]
        %v256 = vld [vmem:[%s187 + $0x51] sm:$0xff]
        %v257 = vld [vmem:[%s187 + $0x61] sm:$0xff]
        %v258 = vld [vmem:[%s187 + $0x71] sm:$0xff]
        %v259 = vld [vmem:[%s187 + $0x81] sm:$0xff]
        %269 = vrot.lane.b32.xlu0 %v251, 32
        %v270 = vpop.permute.xlu0 %269
        %271 = vrot.lane.b32.xlu0 %v252, 32
        %v272 = vpop.permute.xlu0 %271
        %273 = vrot.lane.b32.xlu0 %v253, 32
        %v274 = vpop.permute.xlu0 %273
        %275 = vrot.lane.b32.xlu0 %v254, 32
        %v276 = vpop.permute.xlu0 %275
        %277 = vrot.lane.b32.xlu0 %v255, 32
        %v278 = vpop.permute.xlu0 %277
        %279 = vrot.lane.b32.xlu0 %v256, 32
        %v280 = vpop.permute.xlu0 %279
        %281 = vrot.lane.b32.xlu0 %v257, 32
        %v282 = vpop.permute.xlu0 %281
        %283 = vrot.lane.b32.xlu0 %v258, 32
        %v284 = vpop.permute.xlu0 %283
        %285 = vrot.lane.b32.xlu0 %v259, 32
        %v286 = vpop.permute.xlu0 %285
        %v296 = vsel %vm241, %v251, %v270
        %v297 = vsel %vm241, %v252, %v272
        %v298 = vsel %vm241, %v253, %v274
        %v299 = vsel %vm241, %v254, %v276
        %v300 = vsel %vm241, %v255, %v278
        %v301 = vsel %vm241, %v256, %v280
        %v302 = vsel %vm241, %v257, %v282
        %v303 = vsel %vm241, %v258, %v284
        %v304 = vsel %vm241, %v259, %v286
        %s305 = scalar_lea.vmem %s187, 144
        %v306 = vld [vmem:[%s305] sm:$0xff]
        %v307 = vld [vmem:[%s305 + $0x10] sm:$0xff]
        %v308 = vld [vmem:[%s305 + $0x20] sm:$0xff]
        %v309 = vld [vmem:[%s305 + $0x30] sm:$0xff]
        %v310 = vld [vmem:[%s305 + $0x40] sm:$0xff]
        %v311 = vld [vmem:[%s305 + $0x50] sm:$0xff]
        %v312 = vld [vmem:[%s305 + $0x60] sm:$0xff]
        %v313 = vld [vmem:[%s305 + $0x70] sm:$0xff]
        %v314 = vld [vmem:[%s305 + $0x80] sm:$0xff]
        %324 = vrot.lane.b32.xlu0 %v306, 32
        %v325 = vpop.permute.xlu0 %324
        %326 = vrot.lane.b32.xlu0 %v307, 32
        %v327 = vpop.permute.xlu0 %326
        %328 = vrot.lane.b32.xlu0 %v308, 32
        %v329 = vpop.permute.xlu0 %328
        %330 = vrot.lane.b32.xlu0 %v309, 32
        %v331 = vpop.permute.xlu0 %330
        %332 = vrot.lane.b32.xlu0 %v310, 32
        %v333 = vpop.permute.xlu0 %332
        %334 = vrot.lane.b32.xlu0 %v311, 32
        %v335 = vpop.permute.xlu0 %334
        %336 = vrot.lane.b32.xlu0 %v312, 32
        %v337 = vpop.permute.xlu0 %336
        %338 = vrot.lane.b32.xlu0 %v313, 32
        %v339 = vpop.permute.xlu0 %338
        %340 = vrot.lane.b32.xlu0 %v314, 32
        %v341 = vpop.permute.xlu0 %340
        %v351 = vsel %vm241, %v306, %v325
        %v352 = vsel %vm241, %v307, %v327
        %v353 = vsel %vm241, %v308, %v329
        %v354 = vsel %vm241, %v309, %v331
        %v355 = vsel %vm241, %v310, %v333
        %v356 = vsel %vm241, %v311, %v335
        %v357 = vsel %vm241, %v312, %v337
        %v358 = vsel %vm241, %v313, %v339
        %v359 = vsel %vm241, %v314, %v341
        %s360 = scalar_lea.vmem %s187, 288
        %v361 = vld [vmem:[%s360] sm:$0xff]
        %v362 = vld [vmem:[%s360 + $0x10] sm:$0xff]
        %v363 = vld [vmem:[%s360 + $0x20] sm:$0xff]
        %v364 = vld [vmem:[%s360 + $0x30] sm:$0xff]
        %v365 = vld [vmem:[%s360 + $0x40] sm:$0xff]
        %v366 = vld [vmem:[%s360 + $0x50] sm:$0xff]
        %v367 = vld [vmem:[%s360 + $0x60] sm:$0xff]
        %v368 = vld [vmem:[%s360 + $0x70] sm:$0xff]
        %377 = vrot.lane.b32.xlu0 %v361, 32
        %v378 = vpop.permute.xlu0 %377
        %379 = vrot.lane.b32.xlu0 %v362, 32
        %v380 = vpop.permute.xlu0 %379
        %381 = vrot.lane.b32.xlu0 %v363, 32
        %v382 = vpop.permute.xlu0 %381
        %383 = vrot.lane.b32.xlu0 %v364, 32
        %v384 = vpop.permute.xlu0 %383
        %385 = vrot.lane.b32.xlu0 %v365, 32
        %v386 = vpop.permute.xlu0 %385
        %387 = vrot.lane.b32.xlu0 %v366, 32
        %v388 = vpop.permute.xlu0 %387
        %389 = vrot.lane.b32.xlu0 %v367, 32
        %v390 = vpop.permute.xlu0 %389
        %391 = vrot.lane.b32.xlu0 %v368, 32
        %v392 = vpop.permute.xlu0 %391
        %v401 = vsel %vm241, %v361, %v378
        %v402 = vsel %vm241, %v362, %v380
        %v403 = vsel %vm241, %v363, %v382
        %v404 = vsel %vm241, %v364, %v384
        %v405 = vsel %vm241, %v365, %v386
        %v406 = vsel %vm241, %v366, %v388
        %v407 = vsel %vm241, %v367, %v390
        %v408 = vsel %vm241, %v368, %v392
        %v409 = vld [vmem:[%s360 + $0x1] sm:$0xff]
        %v410 = vld [vmem:[%s360 + $0x11] sm:$0xff]
        %v411 = vld [vmem:[%s360 + $0x21] sm:$0xff]
        %v412 = vld [vmem:[%s360 + $0x31] sm:$0xff]
        %v413 = vld [vmem:[%s360 + $0x41] sm:$0xff]
        %v414 = vld [vmem:[%s360 + $0x51] sm:$0xff]
        %v415 = vld [vmem:[%s360 + $0x61] sm:$0xff]
        %v416 = vld [vmem:[%s360 + $0x71] sm:$0xff]
        %425 = vrot.lane.b32.xlu0 %v409, 32
        %v426 = vpop.permute.xlu0 %425
        %427 = vrot.lane.b32.xlu0 %v410, 32
        %v428 = vpop.permute.xlu0 %427
        %429 = vrot.lane.b32.xlu0 %v411, 32
        %v430 = vpop.permute.xlu0 %429
        %431 = vrot.lane.b32.xlu0 %v412, 32
        %v432 = vpop.permute.xlu0 %431
        %433 = vrot.lane.b32.xlu0 %v413, 32
        %v434 = vpop.permute.xlu0 %433
        %435 = vrot.lane.b32.xlu0 %v414, 32
        %v436 = vpop.permute.xlu0 %435
        %437 = vrot.lane.b32.xlu0 %v415, 32
        %v438 = vpop.permute.xlu0 %437
        %439 = vrot.lane.b32.xlu0 %v416, 32
        %v440 = vpop.permute.xlu0 %439
        %v449 = vsel %vm241, %v409, %v426
        %v450 = vsel %vm241, %v410, %v428
        %v451 = vsel %vm241, %v411, %v430
        %v452 = vsel %vm241, %v412, %v432
        %v453 = vsel %vm241, %v413, %v434
        %v454 = vsel %vm241, %v414, %v436
        %v455 = vsel %vm241, %v415, %v438
        %v456 = vsel %vm241, %v416, %v440
        %s457 = scalar_lea.vmem %s187, 432
        %v458 = vld [vmem:[%s457] sm:$0xff]
        %v459 = vld [vmem:[%s457 + $0x10] sm:$0xff]
        %v460 = vld [vmem:[%s457 + $0x20] sm:$0xff]
        %v461 = vld [vmem:[%s457 + $0x30] sm:$0xff]
        %v462 = vld [vmem:[%s457 + $0x40] sm:$0xff]
        %v463 = vld [vmem:[%s457 + $0x50] sm:$0xff]
        %v464 = vld [vmem:[%s457 + $0x60] sm:$0xff]
        %v465 = vld [vmem:[%s457 + $0x70] sm:$0xff]
        %474 = vrot.lane.b32.xlu0 %v458, 32
        %v475 = vpop.permute.xlu0 %474
        %476 = vrot.lane.b32.xlu0 %v459, 32
        %v477 = vpop.permute.xlu0 %476
        %478 = vrot.lane.b32.xlu0 %v460, 32
        %v479 = vpop.permute.xlu0 %478
        %480 = vrot.lane.b32.xlu0 %v461, 32
        %v481 = vpop.permute.xlu0 %480
        %482 = vrot.lane.b32.xlu0 %v462, 32
        %v483 = vpop.permute.xlu0 %482
        %484 = vrot.lane.b32.xlu0 %v463, 32
        %v485 = vpop.permute.xlu0 %484
        %486 = vrot.lane.b32.xlu0 %v464, 32
        %v487 = vpop.permute.xlu0 %486
        %488 = vrot.lane.b32.xlu0 %v465, 32
        %v489 = vpop.permute.xlu0 %488
        %v498 = vsel %vm241, %v458, %v475
        %v499 = vsel %vm241, %v459, %v477
        %v500 = vsel %vm241, %v460, %v479
        %v501 = vsel %vm241, %v461, %v481
        %v502 = vsel %vm241, %v462, %v483
        %v503 = vsel %vm241, %v463, %v485
        %v504 = vsel %vm241, %v464, %v487
        %v505 = vsel %vm241, %v465, %v489
        %v506 = vlaneseq
        %v507 = vshrl.u32 %v506, 7
        %v508 = vsub.s32 0, %v507
        %v509 = vrot.slane %v194, %v508
        %v510 = vmul.f32 %v242, %v509
        %v511 = vmul.f32 %v243, %v509
        %v512 = vmul.f32 %v244, %v509
        %v513 = vmul.f32 %v245, %v509
        %v514 = vmul.f32 %v246, %v509
        %v515 = vmul.f32 %v247, %v509
        %v516 = vmul.f32 %v248, %v509
        %v517 = vmul.f32 %v249, %v509
        %v518 = vlaneseq
        %v519 = vshrl.u32 %v518, 7
        %v520 = vsub.s32 1, %v519
        %v521 = vrot.slane %v194, %v520
        %v522 = vmul.f32 %v351, %v521
        %v523 = vmul.f32 %v352, %v521
        %v524 = vmul.f32 %v353, %v521
        %v525 = vmul.f32 %v354, %v521
        %v526 = vmul.f32 %v355, %v521
        %v527 = vmul.f32 %v356, %v521
        %v528 = vmul.f32 %v357, %v521
        %v529 = vmul.f32 %v358, %v521
        %v530 = vadd.f32 %v510, %v522
        %v531 = vadd.f32 %v511, %v523
        %v532 = vadd.f32 %v512, %v524
        %v533 = vadd.f32 %v513, %v525
        %v534 = vadd.f32 %v514, %v526
        %v535 = vadd.f32 %v515, %v527
        %v536 = vadd.f32 %v516, %v528
        %v537 = vadd.f32 %v517, %v529
        %v538 = vlaneseq
        %v539 = vshrl.u32 %v538, 7
        %v540 = vsub.s32 2, %v539
        %v541 = vrot.slane %v194, %v540
        %v542 = vmul.f32 %v296, %v541
        %v543 = vmul.f32 %v297, %v541
        %v544 = vmul.f32 %v298, %v541
        %v545 = vmul.f32 %v299, %v541
        %v546 = vmul.f32 %v300, %v541
        %v547 = vmul.f32 %v301, %v541
        %v548 = vmul.f32 %v302, %v541
        %v549 = vmul.f32 %v303, %v541
        %v550 = vadd.f32 %v530, %v542
        %v551 = vadd.f32 %v531, %v543
        %v552 = vadd.f32 %v532, %v544
        %v553 = vadd.f32 %v533, %v545
        %v554 = vadd.f32 %v534, %v546
        %v555 = vadd.f32 %v535, %v547
        %v556 = vadd.f32 %v536, %v548
        %v557 = vadd.f32 %v537, %v549
        %v558 = vlaneseq
        %v559 = vshrl.u32 %v558, 7
        %v560 = vsub.s32 3, %v559
        %v561 = vrot.slane %v194, %v560
        %v562 = vmul.f32 %v401, %v561
        %v563 = vmul.f32 %v402, %v561
        %v564 = vmul.f32 %v403, %v561
        %v565 = vmul.f32 %v404, %v561
        %v566 = vmul.f32 %v405, %v561
        %v567 = vmul.f32 %v406, %v561
        %v568 = vmul.f32 %v407, %v561
        %v569 = vmul.f32 %v408, %v561
        %v570 = vadd.f32 %v550, %v562
        %v571 = vadd.f32 %v551, %v563
        %v572 = vadd.f32 %v552, %v564
        %v573 = vadd.f32 %v553, %v565
        %v574 = vadd.f32 %v554, %v566
        %v575 = vadd.f32 %v555, %v567
        %v576 = vadd.f32 %v556, %v568
        %v577 = vadd.f32 %v557, %v569
        %v578 = vlaneseq
        %v579 = vshrl.u32 %v578, 7
        %v580 = vsub.s32 4, %v579
        %v581 = vrot.slane %v194, %v580
        %v582 = vmul.f32 %v498, %v581
        %v583 = vmul.f32 %v499, %v581
        %v584 = vmul.f32 %v500, %v581
        %v585 = vmul.f32 %v501, %v581
        %v586 = vmul.f32 %v502, %v581
        %v587 = vmul.f32 %v503, %v581
        %v588 = vmul.f32 %v504, %v581
        %v589 = vmul.f32 %v505, %v581
        %v590 = vadd.f32 %v570, %v582
        %v591 = vadd.f32 %v571, %v583
        %v592 = vadd.f32 %v572, %v584
        %v593 = vadd.f32 %v573, %v585
        %v594 = vadd.f32 %v574, %v586
        %v595 = vadd.f32 %v575, %v587
        %v596 = vadd.f32 %v576, %v588
        %v597 = vadd.f32 %v577, %v589
        %v598 = vlaneseq
        %v599 = vshrl.u32 %v598, 7
        %v600 = vsub.s32 5, %v599
        %v601 = vrot.slane %v194, %v600
        %v602 = vmul.f32 %v449, %v601
        %v603 = vmul.f32 %v450, %v601
        %v604 = vmul.f32 %v451, %v601
        %v605 = vmul.f32 %v452, %v601
        %v606 = vmul.f32 %v453, %v601
        %v607 = vmul.f32 %v454, %v601
        %v608 = vmul.f32 %v455, %v601
        %v609 = vmul.f32 %v456, %v601
        %v610 = vadd.f32 %v590, %v602
        %v611 = vadd.f32 %v591, %v603
        %v612 = vadd.f32 %v592, %v604
        %v613 = vadd.f32 %v593, %v605
        %v614 = vadd.f32 %v594, %v606
        %v615 = vadd.f32 %v595, %v607
        %v616 = vadd.f32 %v596, %v608
        %v617 = vadd.f32 %v597, %v609
        %v618 = vlaneseq
        %v619 = vshrl.u32 %v618, 7
        %v620 = vsub.s32 6, %v619
        %v621 = vrot.slane %v194, %v620
        %v622 = vmul.f32 %v243, %v621
        %v623 = vmul.f32 %v244, %v621
        %v624 = vmul.f32 %v245, %v621
        %v625 = vmul.f32 %v246, %v621
        %v626 = vmul.f32 %v247, %v621
        %v627 = vmul.f32 %v248, %v621
        %v628 = vmul.f32 %v249, %v621
        %v629 = vmul.f32 %v250, %v621
        %v630 = vadd.f32 %v610, %v622
        %v631 = vadd.f32 %v611, %v623
        %v632 = vadd.f32 %v612, %v624
        %v633 = vadd.f32 %v613, %v625
        %v634 = vadd.f32 %v614, %v626
        %v635 = vadd.f32 %v615, %v627
        %v636 = vadd.f32 %v616, %v628
        %v637 = vadd.f32 %v617, %v629
        %v638 = vlaneseq
        %v639 = vshrl.u32 %v638, 7
        %v640 = vsub.s32 7, %v639
        %v641 = vrot.slane %v194, %v640
        %v642 = vmul.f32 %v352, %v641
        %v643 = vmul.f32 %v353, %v641
        %v644 = vmul.f32 %v354, %v641
        %v645 = vmul.f32 %v355, %v641
        %v646 = vmul.f32 %v356, %v641
        %v647 = vmul.f32 %v357, %v641
        %v648 = vmul.f32 %v358, %v641
        %v649 = vmul.f32 %v359, %v641
        %v650 = vadd.f32 %v630, %v642
        %v651 = vadd.f32 %v631, %v643
        %v652 = vadd.f32 %v632, %v644
        %v653 = vadd.f32 %v633, %v645
        %v654 = vadd.f32 %v634, %v646
        %v655 = vadd.f32 %v635, %v647
        %v656 = vadd.f32 %v636, %v648
        %v657 = vadd.f32 %v637, %v649
        %v658 = vlaneseq
        %v659 = vshrl.u32 %v658, 7
        %v660 = vsub.s32 0, %v659
        %v661 = vrot.slane %v195, %v660
        %v662 = vmul.f32 %v297, %v661
        %v663 = vmul.f32 %v298, %v661
        %v664 = vmul.f32 %v299, %v661
        %v665 = vmul.f32 %v300, %v661
        %v666 = vmul.f32 %v301, %v661
        %v667 = vmul.f32 %v302, %v661
        %v668 = vmul.f32 %v303, %v661
        %v669 = vmul.f32 %v304, %v661
        %v670 = vadd.f32 %v650, %v662
        %v671 = vadd.f32 %v651, %v663
        %v672 = vadd.f32 %v652, %v664
        %v673 = vadd.f32 %v653, %v665
        %v674 = vadd.f32 %v654, %v666
        %v675 = vadd.f32 %v655, %v667
        %v676 = vadd.f32 %v656, %v668
        %v677 = vadd.f32 %v657, %v669
        %vm678 = vcmask 523264
        %v679 = vsel %vm678, %v670, 0.0
        %v680 = vsel %vm678, %v671, 0.0
        %v681 = vadd.f32 %v679, %v680
        %v682 = vsel %vm678, %v672, 0.0
        %v683 = vadd.f32 %v681, %v682
        %v684 = vsel %vm678, %v673, 0.0
        %v685 = vadd.f32 %v683, %v684
        %v686 = vsel %vm678, %v674, 0.0
        %v687 = vadd.f32 %v685, %v686
        %v688 = vsel %vm678, %v675, 0.0
        %v689 = vadd.f32 %v687, %v688
        %v690 = vsel %vm678, %v676, 0.0
        %v691 = vadd.f32 %v689, %v690
        %v692 = vsel %vm678, %v677, 0.0
        %v693 = vadd.f32 %v691, %v692
        %v694 = vrot.slane %v693, 4
        %v695 = vadd.f32 %v693, %v694
        %v696 = vrot.slane %v695, 2
        %v697 = vadd.f32 %v695, %v696
        %v698 = vrot.slane %v697, 1
        %v699 = vadd.f32 %v697, %v698
        %v700 = vrcp.pop 64.0
        %v701 = vmul.f32 %v699, %v700
        %v702 = vsub.f32 %v670, %v701
        %v703 = vsub.f32 %v671, %v701
        %v704 = vsub.f32 %v672, %v701
        %v705 = vsub.f32 %v673, %v701
        %v706 = vsub.f32 %v674, %v701
        %v707 = vsub.f32 %v675, %v701
        %v708 = vsub.f32 %v676, %v701
        %v709 = vsub.f32 %v677, %v701
        %v710 = vmul.f32 %v702, %v702
        %v711 = vmul.f32 %v703, %v703
        %v712 = vmul.f32 %v704, %v704
        %v713 = vmul.f32 %v705, %v705
        %v714 = vmul.f32 %v706, %v706
        %v715 = vmul.f32 %v707, %v707
        %v716 = vmul.f32 %v708, %v708
        %v717 = vmul.f32 %v709, %v709
        %v718 = vsel %vm678, %v710, 0.0
        %v719 = vsel %vm678, %v711, 0.0
        %v720 = vadd.f32 %v718, %v719
        %v721 = vsel %vm678, %v712, 0.0
        %v722 = vadd.f32 %v720, %v721
        %v723 = vsel %vm678, %v713, 0.0
        %v724 = vadd.f32 %v722, %v723
        %v725 = vsel %vm678, %v714, 0.0
        %v726 = vadd.f32 %v724, %v725
        %v727 = vsel %vm678, %v715, 0.0
        %v728 = vadd.f32 %v726, %v727
        %v729 = vsel %vm678, %v716, 0.0
        %v730 = vadd.f32 %v728, %v729
        %v731 = vsel %vm678, %v717, 0.0
        %v732 = vadd.f32 %v730, %v731
        %v733 = vrot.slane %v732, 4
        %v734 = vadd.f32 %v732, %v733
        %v735 = vrot.slane %v734, 2
        %v736 = vadd.f32 %v734, %v735
        %v737 = vrot.slane %v736, 1
        %v738 = vadd.f32 %v736, %v737
        %v739 = vmul.f32 %v738, %v700
        %v740 = vadd.f32 %v739, 1e-05
        %v741 = vrsqrt.pop %v740
        %v742 = vmul.f32 %v702, %v741
        %v743 = vmul.f32 %v703, %v741
        %v744 = vmul.f32 %v704, %v741
        %v745 = vmul.f32 %v705, %v741
        %v746 = vmul.f32 %v706, %v741
        %v747 = vmul.f32 %v707, %v741
        %v748 = vmul.f32 %v708, %v741
        %v749 = vmul.f32 %v709, %v741
        %v750 = vld [vmem:[%s2] sm:$0x1]
        %v752 = vlaneseq
        %v753 = vshrl.u32 %v752, 7
        %v754 = vsub.s32 0, %v753
        %v755 = vrot.slane %v750, %v754
        %v757 = vmul.f32 %v742, %v755
        %v758 = vmul.f32 %v743, %v755
        %v759 = vmul.f32 %v744, %v755
        %v760 = vmul.f32 %v745, %v755
        %v761 = vmul.f32 %v746, %v755
        %v762 = vmul.f32 %v747, %v755
        %v763 = vmul.f32 %v748, %v755
        %v764 = vmul.f32 %v749, %v755
        %s765 = scalar_lea.vmem %s2, 1
        %v766 = vld [vmem:[%s765] sm:$0x1]
        %v768 = vlaneseq
        %v769 = vshrl.u32 %v768, 7
        %v770 = vsub.s32 0, %v769
        %v771 = vrot.slane %v766, %v770
        %v773 = vadd.f32 %v757, %v771
        %v774 = vadd.f32 %v758, %v771
        %v775 = vadd.f32 %v759, %v771
        %v776 = vadd.f32 %v760, %v771
        %v777 = vadd.f32 %v761, %v771
        %v778 = vadd.f32 %v762, %v771
        %v779 = vadd.f32 %v763, %v771
        %v780 = vadd.f32 %v764, %v771
        %vm781 = vcmp.ge.f32.partialorder %v773, 0.0
        %vm782 = vcmp.ge.f32.partialorder %v774, 0.0
        %vm783 = vcmp.ge.f32.partialorder %v775, 0.0
        %vm784 = vcmp.ge.f32.partialorder %v776, 0.0
        %vm785 = vcmp.ge.f32.partialorder %v777, 0.0
        %vm786 = vcmp.ge.f32.partialorder %v778, 0.0
        %vm787 = vcmp.ge.f32.partialorder %v779, 0.0
        %vm788 = vcmp.ge.f32.partialorder %v780, 0.0
        %v789 = vmul.f32 %v773, 0.01
        %v790 = vmul.f32 %v774, 0.01
        %v791 = vmul.f32 %v775, 0.01
        %v792 = vmul.f32 %v776, 0.01
        %v793 = vmul.f32 %v777, 0.01
        %v794 = vmul.f32 %v778, 0.01
        %v795 = vmul.f32 %v779, 0.01
        %v796 = vmul.f32 %v780, 0.01
        %v797 = vsel %vm781, %v773, %v789
        %v798 = vsel %vm782, %v774, %v790
        %v799 = vsel %vm783, %v775, %v791
        %v800 = vsel %vm784, %v776, %v792
        %v801 = vsel %vm785, %v777, %v793
        %v802 = vsel %vm786, %v778, %v794
        %v803 = vsel %vm787, %v779, %v795
        %v804 = vsel %vm788, %v780, %v796
        %813 = vrot.lane.b32.xlu0 %v797, 96
        %v814 = vpop.permute.xlu0 %813
        %815 = vrot.lane.b32.xlu0 %v798, 96
        %v816 = vpop.permute.xlu0 %815
        %817 = vrot.lane.b32.xlu0 %v799, 96
        %v818 = vpop.permute.xlu0 %817
        %819 = vrot.lane.b32.xlu0 %v800, 96
        %v820 = vpop.permute.xlu0 %819
        %821 = vrot.lane.b32.xlu0 %v801, 96
        %v822 = vpop.permute.xlu0 %821
        %823 = vrot.lane.b32.xlu0 %v802, 96
        %v824 = vpop.permute.xlu0 %823
        %825 = vrot.lane.b32.xlu0 %v803, 96
        %v826 = vpop.permute.xlu0 %825
        %827 = vrot.lane.b32.xlu0 %v804, 96
        %v828 = vpop.permute.xlu0 %827
        %v837 = vmul.f32 %v797, %v814
        %v838 = vmul.f32 %v798, %v816
        %v839 = vmul.f32 %v799, %v818
        %v840 = vmul.f32 %v800, %v820
        %v841 = vmul.f32 %v801, %v822
        %v842 = vmul.f32 %v802, %v824
        %v843 = vmul.f32 %v803, %v826
        %v844 = vmul.f32 %v804, %v828
        %v845 = vsel %vm241, %v837, 0.0
        %846 = vadd.xlane.f32.xlu0 %v845
        %v847 = vpop.xlane.xlu0 %846
        %v848 = vsel %vm241, %v838, 0.0
        %849 = vadd.xlane.f32.xlu0 %v848
        %v850 = vpop.xlane.xlu0 %849
        %v851 = vsel %vm241, %v839, 0.0
        %852 = vadd.xlane.f32.xlu0 %v851
        %v853 = vpop.xlane.xlu0 %852
        %v854 = vsel %vm241, %v840, 0.0
        %855 = vadd.xlane.f32.xlu0 %v854
        %v856 = vpop.xlane.xlu0 %855
        %v857 = vsel %vm241, %v841, 0.0
        %858 = vadd.xlane.f32.xlu0 %v857
        %v859 = vpop.xlane.xlu0 %858
        %v860 = vsel %vm241, %v842, 0.0
        %861 = vadd.xlane.f32.xlu0 %v860
        %v862 = vpop.xlane.xlu0 %861
        %v863 = vsel %vm241, %v843, 0.0
        %864 = vadd.xlane.f32.xlu0 %v863
        %v865 = vpop.xlane.xlu0 %864
        %v866 = vsel %vm241, %v844, 0.0
        %867 = vadd.xlane.f32.xlu0 %v866
        %v868 = vpop.xlane.xlu0 %867
        %v869 = vmul.f32 %v847, 0.17677669
        %v870 = vmul.f32 %v850, 0.17677669
        %v871 = vmul.f32 %v853, 0.17677669
        %v872 = vmul.f32 %v856, 0.17677669
        %v873 = vmul.f32 %v859, 0.17677669
        %v874 = vmul.f32 %v862, 0.17677669
        %v875 = vmul.f32 %v865, 0.17677669
        %v876 = vmul.f32 %v868, 0.17677669
        %v885 = vlaneseq
        %v886 = vand.u32 %v885, 127
        %v887 = vlaneseq
        %v888 = vshrl.u32 %v887, 7
        %v889 = vsub.s32 %v886, %v888
        %v890 = vrot.slane %v869, %v889
        %v891 = vlaneseq
        %v892 = vshrl.u32 %v891, 7
        %v893 = vsub.s32 %v886, %v892
        %v894 = vrot.slane %v870, %v893
        %v895 = vlaneseq
        %v896 = vshrl.u32 %v895, 7
        %v897 = vsub.s32 %v886, %v896
        %v898 = vrot.slane %v871, %v897
        %v899 = vlaneseq
        %v900 = vshrl.u32 %v899, 7
        %v901 = vsub.s32 %v886, %v900
        %v902 = vrot.slane %v872, %v901
        %v903 = vlaneseq
        %v904 = vshrl.u32 %v903, 7
        %v905 = vsub.s32 %v886, %v904
        %v906 = vrot.slane %v873, %v905
        %v907 = vlaneseq
        %v908 = vshrl.u32 %v907, 7
        %v909 = vsub.s32 %v886, %v908
        %v910 = vrot.slane %v874, %v909
        %v911 = vlaneseq
        %v912 = vshrl.u32 %v911, 7
        %v913 = vsub.s32 %v886, %v912
        %v914 = vrot.slane %v875, %v913
        %v915 = vlaneseq
        %v916 = vshrl.u32 %v915, 7
        %v917 = vsub.s32 %v886, %v916
        %v918 = vrot.slane %v876, %v917
        %vm919 = vcmask 1041409
        %v920 = vsel %vm919, %v894, %v890
        %vm921 = vcmask 1042434
        %v922 = vsel %vm921, %v898, %v920
        %vm923 = vcmask 1043459
        %v924 = vsel %vm923, %v902, %v922
        %vm925 = vcmask 1044484
        %v926 = vsel %vm925, %v906, %v924
        %vm927 = vcmask 1045509
        %v928 = vsel %vm927, %v910, %v926
        %vm929 = vcmask 1046534
        %v930 = vsel %vm929, %v914, %v928
        %vm931 = vcmask 1047559
        %v932 = vsel %vm931, %v918, %v930
        %vm934 = vcmask 64512
        %935 = vst.msk [vmem:[%s181] sm:$0xff] %vm934, %v932
        %s936 = sand.u32 %s98, 1
        %s937 = scalar_lea.sflag [#allocation3], %s936
        %s938 = sand.u32 %s98, 1
        %s939 = smul.addr %s938, 8
        %s940 = scalar_lea.vmem [#allocation2], %s939
        // Predicated region
        $region33: #{tpu_custom_call.1} parent=31 // pred_check
          %p941 = pneg %p108
        $region34: #{tpu_custom_call.1} parent=31 // pred_check_branch
          %943 = sbr.rel (%p941) target = $region36
        $region35: #{tpu_custom_call.1} parent=31 // pred_region
          %s945 = ssub.s32 128, 128
          %946 = vsyncadd %s937, %s945
          %s947 = smul.addr %s17, 128
          %s948 = scalar_lea.hbm %s3, %s947
          %s950 = sshll.u32 %s940, 4
          %s951 = int_to_ptr.vmem [resolvable:$true] %s950
          %953 = dma.vmem_to_hbm [thread:$0]  %s951, 128, %s948, %s937
        $region36: #{tpu_custom_call.1} parent=31 // pred_fallthru
          _
      $region32: #{tpu_custom_call.1} parent=5 // pred_fallthru
        _
      %p954 = scmp.le.s32.totalorder 2, %s12
      // Predicated region
      $region37: #{tpu_custom_call.1} parent=5 // pred_check
        %p955 = pneg %p954
      $region38: #{tpu_custom_call.1} parent=5 // pred_check_branch
        %957 = sbr.rel (%p955) target = $region40
      $region39: #{tpu_custom_call.1} parent=5 // pred_region
        %s958 = ssub.s32 %s12, 2
        // Predicated region
        $region41: #{tpu_custom_call.1} parent=39 // pred_check
          %p959 = pneg %p114
        $region42: #{tpu_custom_call.1} parent=39 // pred_check_branch
          %961 = sbr.rel (%p959) target = $region44
        $region43: #{tpu_custom_call.1} parent=39 // pred_region
          %s962 = sand.u32 %s99, 1
          %s963 = scalar_lea.sflag [#allocation3], %s962
          %s964 = sand.u32 %s99, 1
          %s965 = smul.addr %s964, 8
          %s966 = scalar_lea.vmem [#allocation2], %s965
          %967 = dma.done %s963, 128
        $region44: #{tpu_custom_call.1} parent=39 // pred_fallthru
          _
      $region40: #{tpu_custom_call.1} parent=5 // pred_fallthru
        _
    $region6: #{tpu_custom_call.1} parent=1 // loop_footer
      %s16 = sadd.s32 1, %s12
    $region7: #{tpu_custom_call.1} parent=1 // loop_footer_branch
      %11 = sbr.rel target = $region3
    $region8: #{tpu_custom_call.1} parent=1 // loop_exit
      _
    %968 = vsyncpa [#allocation3], 1
    %s969 = scalar_lea.sflag [#allocation3], 1
    %970 = vsyncpa %s969, 1

</llo_original>
